<compile_context>
chip_gen: v6e
topology: v6e:2x2x1
jax: 0.10.0
libtpu: 0.0.40
codegen_flags: <defaults>
</compile_context>

<pallas_src>
import functools

import jax
import jax.numpy as jnp
from jax.experimental import pallas as pl
from jax.experimental.pallas import tpu as pltpu


def _ffn_kernel(x_ref, w13_ref, w2_ref, o_ref, acc_ref, *, ht):
    """One grid step: one (token tile, hidden tile); accumulate the down-proj."""
    h = pl.program_id(1)

    @pl.when(h == 0)
    def _():
        acc_ref[...] = jnp.zeros_like(acc_ref)

    x = x_ref[...]                                                 # (tm, D)
    # Single wide matmul for gate||up projections: (tm, D) @ (D, 2*ht).
    h13 = jnp.dot(x, w13_ref[...], preferred_element_type=jnp.float32)
    h1 = h13[:, :ht]                                               # gate pre-act
    h3 = h13[:, ht:]                                               # up proj
    gate = (h1 * jax.nn.sigmoid(h1)) * h3                          # SiLU(w1 x) * w3 x (f32)
    acc_ref[...] += jnp.dot(gate.astype(w2_ref.dtype), w2_ref[...],
                            preferred_element_type=jnp.float32)    # (tm, D)

    @pl.when(h == pl.num_programs(1) - 1)
    def _():
        o_ref[...] = acc_ref[...].astype(o_ref.dtype)


def _round_up(x, m):
    return ((x + m - 1) // m) * m


def _pick_hidden_tile(H, desired):
    """Largest lane-aligned hidden tile <= desired that divides H (or H itself)."""
    if H <= desired:
        return H
    best = None
    t = 128
    while t <= desired:
        if H % t == 0:
            best = t
        t += 128
    return best if best is not None else H


def feed_forward(x, w1, w3, w2, *, tm=256, hidden_tile=512):
    """x: (T, D); w1, w3: (D, H) pre-transposed; w2: (H, D). Returns (T, D)."""
    T, D = x.shape
    H = w1.shape[1]
    assert w3.shape == (D, H) and w2.shape == (H, D)
    assert D % 128 == 0, "feature dim must be lane-aligned (multiple of 128)"

    # Clamp tiles to the problem size (small problems -> single grid step).
    tm = min(tm, _round_up(T, 16))
    ht = _pick_hidden_tile(H, hidden_tile)
    n_h = H // ht

    # Pad tokens so the token grid divides evenly; padded rows are zeros and
    # are sliced off at the end.
    T_pad = _round_up(T, tm)
    if T_pad != T:
        x = jnp.pad(x, ((0, T_pad - T), (0, 0)))

    # Fuse gate (w1) and up (w3) weights so hidden-tile h of w13 holds
    # [w1_tile_h | w3_tile_h] of width 2*ht (one wide MXU matmul per step).
    w13 = jnp.concatenate(
        [w1.reshape(D, n_h, ht), w3.reshape(D, n_h, ht)], axis=-1
    ).reshape(D, 2 * H)

    # Explicit VMEM budget: double-buffered input/output tiles + f32 accumulator.
    itemsize = x.dtype.itemsize
    tile_bytes = (tm * D + D * 2 * ht + ht * D + tm * D) * itemsize
    acc_bytes = tm * D * 4
    vmem_limit = int(min(max(2 * tile_bytes + acc_bytes + (4 << 20), 32 << 20),
                         64 << 20))

    out = pl.pallas_call(
        functools.partial(_ffn_kernel, ht=ht),
        out_shape=jax.ShapeDtypeStruct((T_pad, D), x.dtype),
        grid_spec=pltpu.PrefetchScalarGridSpec(
            num_scalar_prefetch=0,
            # token tiles first (parallel), hidden reduction last (arbitrary)
            grid=(T_pad // tm, n_h),
            in_specs=[
                pl.BlockSpec((tm, D), lambda t, h: (t, 0)),        # x token tile
                pl.BlockSpec((D, 2 * ht), lambda t, h: (0, h)),    # [w1|w3] tile
                pl.BlockSpec((ht, D), lambda t, h: (h, 0)),        # w2 tile
            ],
            out_specs=pl.BlockSpec((tm, D), lambda t, h: (t, 0)),
            scratch_shapes=[pltpu.VMEM((tm, D), jnp.float32)],
        ),
        compiler_params=pltpu.CompilerParams(
            dimension_semantics=("parallel", "arbitrary"),
            vmem_limit_bytes=vmem_limit),
    )(x, w13, w2)
    return out[:T]


def _compute_hidden_dim(dim, multiple_of, ffn_dim_multiplier=None):
    hidden = 4 * dim
    hidden = int(2 * hidden / 3)
    if ffn_dim_multiplier is not None:
        hidden = int(ffn_dim_multiplier * hidden)
    hidden = multiple_of * ((hidden + multiple_of - 1) // multiple_of)
    return hidden


if __name__ == "__main__":
    # Small ModelArgs-consistent shapes.
    dim = 128
    multiple_of = 128
    hidden_dim = _compute_hidden_dim(dim, multiple_of)   # -> 384
    batch, seq = 2, 8

    key = jax.random.PRNGKey(0)
    kx, k1, k2, k3 = jax.random.split(key, 4)
    x = jax.random.normal(kx, (batch, seq, dim), dtype=jnp.float32)
    # Deterministic "Linear" weights (no bias), pre-transposed for the kernel.
    w1 = jax.random.normal(k1, (dim, hidden_dim), dtype=jnp.float32) * 0.02  # gate
    w3 = jax.random.normal(k3, (dim, hidden_dim), dtype=jnp.float32) * 0.02  # up
    w2 = jax.random.normal(k2, (hidden_dim, dim), dtype=jnp.float32) * 0.02  # down

    # bf16 operands (MXU-native); kernel accumulates in f32.
    xb = x.astype(jnp.bfloat16)
    w1b = w1.astype(jnp.bfloat16)
    w3b = w3.astype(jnp.bfloat16)
    w2b = w2.astype(jnp.bfloat16)

    x_tok = xb.reshape(batch * seq, dim)                 # (T, D) token-major
    out = feed_forward(x_tok, w1b, w3b, w2b)
    out = jax.block_until_ready(out)
    out_f32 = out.astype(jnp.float32).reshape(batch, seq, dim)

    # Pure-JAX f32 reference on the same bf16-quantized operands.
    xr = x_tok.astype(jnp.float32)
    w1r, w3r, w2r = (w.astype(jnp.float32) for w in (w1b, w3b, w2b))
    h1 = xr @ w1r
    ref = ((h1 * jax.nn.sigmoid(h1)) * (xr @ w3r)) @ w2r
    ref = ref.reshape(batch, seq, dim)

    max_err = float(jnp.max(jnp.abs(out_f32 - ref)))
    assert max_err < 2e-3, f"mismatch vs reference: max abs err {max_err}"

    print("KERNEL_OK")
</pallas_src>

<mosaic_0001>
module attributes {stable_mosaic.version = 11 : i64} {
  func.func @_ffn_kernel(%arg0: i32, %arg1: i32, %arg2: memref<16x128xbf16, #tpu.memory_space<vmem>>, %arg3: memref<128x768xbf16, #tpu.memory_space<vmem>>, %arg4: memref<384x128xbf16, #tpu.memory_space<vmem>>, %arg5: memref<16x128xbf16, #tpu.memory_space<vmem>>, %arg6: memref<16x128xf32, #tpu.memory_space<vmem>>) attributes {dimension_semantics = [#tpu.dimension_semantics<parallel>, #tpu.dimension_semantics<arbitrary>], iteration_bounds = array<i64: 1, 1>, scalar_prefetch = 0 : i64, scratch_operands = 1 : i64, tpu.core_type = #tpu.core_type<tc>, window_params = [{transform_indices = @transform_0, window_bounds = array<i64: 16, 128>}, {transform_indices = @transform_1, window_bounds = array<i64: 128, 768>}, {transform_indices = @transform_2, window_bounds = array<i64: 384, 128>}, {transform_indices = @transform_3, window_bounds = array<i64: 16, 128>}]} {
    %c0_i32 = arith.constant 0 : i32
    %0 = arith.cmpi eq, %arg1, %c0_i32 : i32
    %1 = arith.extui %0 : i1 to i32
    %c0_i32_0 = arith.constant 0 : i32
    %2 = arith.cmpi ne, %1, %c0_i32_0 : i32
    scf.if %2 {
      %cst_14 = arith.constant 0.000000e+00 : f32
      %24 = vector.broadcast %cst_14 : f32 to vector<16x128xf32>
      %c0_15 = arith.constant 0 : index
      %c0_16 = arith.constant 0 : index
      %25 = vector.load %arg6[%c0_15, %c0_16] : memref<16x128xf32, #tpu.memory_space<vmem>>, vector<16x128xf32>
      tpu.vector_store %arg6[%c0_15, %c0_16], %24 {strides = array<i32>} : memref<16x128xf32, #tpu.memory_space<vmem>>, vector<16x128xf32>,
    } else {
    }
    %c0 = arith.constant 0 : index
    %c0_1 = arith.constant 0 : index
    %3 = vector.load %arg2[%c0, %c0_1] : memref<16x128xbf16, #tpu.memory_space<vmem>>, vector<16x128xbf16>
    %c0_2 = arith.constant 0 : index
    %c0_3 = arith.constant 0 : index
    %4 = vector.load %arg3[%c0_2, %c0_3] : memref<128x768xbf16, #tpu.memory_space<vmem>>, vector<128x768xbf16>
    %cst = arith.constant dense<0.000000e+00> : vector<16x768xf32>
    %5 = tpu.matmul %3, %4, %cst {dimension_numbers = #tpu.dot_dimension_numbers<[1], [0], [0], [1], [0, 0, 1, 1], [], []>} : vector<16x128xbf16>, vector<128x768xbf16>, vector<16x768xf32> -> vector<16x768xf32>
    %6 = vector.extract_strided_slice %5 {offsets = [0, 0], sizes = [16, 384], strides = [1, 1]} : vector<16x768xf32> to vector<16x384xf32>
    %7 = vector.extract_strided_slice %5 {offsets = [0, 384], sizes = [16, 384], strides = [1, 1]} : vector<16x768xf32> to vector<16x384xf32>
    %8 = arith.negf %6 : vector<16x384xf32>
    %9 = math.exp %8 : vector<16x384xf32>
    %cst_4 = arith.constant 1.000000e+00 : f32
    %10 = vector.broadcast %cst_4 : f32 to vector<16x384xf32>
    %11 = arith.addf %10, %9 : vector<16x384xf32>
    %12 = arith.divf %10, %11 : vector<16x384xf32>
    %13 = arith.mulf %6, %12 : vector<16x384xf32>
    %14 = arith.mulf %13, %7 : vector<16x384xf32>
    %c0_5 = arith.constant 0 : index
    %c0_6 = arith.constant 0 : index
    %15 = vector.load %arg6[%c0_5, %c0_6] : memref<16x128xf32, #tpu.memory_space<vmem>>, vector<16x128xf32>
    %16 = arith.truncf %14 : vector<16x384xf32> to vector<16x384xbf16>
    %c0_7 = arith.constant 0 : index
    %c0_8 = arith.constant 0 : index
    %17 = vector.load %arg4[%c0_7, %c0_8] : memref<384x128xbf16, #tpu.memory_space<vmem>>, vector<384x128xbf16>
    %cst_9 = arith.constant dense<0.000000e+00> : vector<16x128xf32>
    %18 = tpu.matmul %16, %17, %cst_9 {dimension_numbers = #tpu.dot_dimension_numbers<[1], [0], [0], [1], [0, 0, 1, 1], [], []>} : vector<16x384xbf16>, vector<384x128xbf16>, vector<16x128xf32> -> vector<16x128xf32>
    %19 = arith.addf %15, %18 : vector<16x128xf32>
    %c0_10 = arith.constant 0 : index
    %c0_11 = arith.constant 0 : index
    %20 = vector.load %arg6[%c0_10, %c0_11] : memref<16x128xf32, #tpu.memory_space<vmem>>, vector<16x128xf32>
    tpu.vector_store %arg6[%c0_10, %c0_11], %19 {strides = array<i32>} : memref<16x128xf32, #tpu.memory_space<vmem>>, vector<16x128xf32>,
    %c0_i32_12 = arith.constant 0 : i32
    %21 = arith.cmpi eq, %arg1, %c0_i32_12 : i32
    %22 = arith.extui %21 : i1 to i32
    %c0_i32_13 = arith.constant 0 : i32
    %23 = arith.cmpi ne, %22, %c0_i32_13 : i32
    scf.if %23 {
      %c0_14 = arith.constant 0 : index
      %c0_15 = arith.constant 0 : index
      %24 = vector.load %arg6[%c0_14, %c0_15] : memref<16x128xf32, #tpu.memory_space<vmem>>, vector<16x128xf32>
      %25 = arith.truncf %24 : vector<16x128xf32> to vector<16x128xbf16>
      %c0_16 = arith.constant 0 : index
      %c0_17 = arith.constant 0 : index
      %26 = vector.load %arg5[%c0_16, %c0_17] : memref<16x128xbf16, #tpu.memory_space<vmem>>, vector<16x128xbf16>
      tpu.vector_store %arg5[%c0_16, %c0_17], %25 {strides = array<i32>} : memref<16x128xbf16, #tpu.memory_space<vmem>>, vector<16x128xbf16>,
    } else {
    }
    return
  }
  func.func @transform_0(%arg0: i32, %arg1: i32) -> (i32, i32) {
    %c0_i32 = arith.constant 0 : i32
    %c0_i32_0 = arith.constant 0 : i32
    return %arg0, %c0_i32 : i32, i32
  }
  func.func @transform_1(%arg0: i32, %arg1: i32) -> (i32, i32) {
    %c0_i32 = arith.constant 0 : i32
    %c0_i32_0 = arith.constant 0 : i32
    return %c0_i32, %arg1 : i32, i32
  }
  func.func @transform_2(%arg0: i32, %arg1: i32) -> (i32, i32) {
    %c0_i32 = arith.constant 0 : i32
    %c0_i32_0 = arith.constant 0 : i32
    return %arg1, %c0_i32 : i32, i32
  }
  func.func @transform_3(%arg0: i32, %arg1: i32) -> (i32, i32) {
    %c0_i32 = arith.constant 0 : i32
    %c0_i32_0 = arith.constant 0 : i32
    return %arg0, %c0_i32 : i32, i32
  }
}

</mosaic_0001>

<llo_original>
// kernel: tpu_custom_call.1
$region0: #{tpu_custom_call.1}
  #allocation0 [shape = 'u32[]', space=smem, size = 0x4, offset = 0x4, fixed_abs, tag = 'smem constant byte address 0x4 - core index']
  #allocation1 [shape = 'u32[144,128]{1,0:T(1,128)}', space=vmem, size = 0x12000, scoped, tag = 'internal scratch']
  #allocation2 [shape = 'f32[16,128]{1,0:T(8,128)}', space=vmem, size = 0x2000, scoped, tag = 'scratch operand']
  %s0 = inlined_call_operand.hbm [shape: bf16[16,128], index: 0, kind: input, shape index: {}]
  %s1 = inlined_call_operand.hbm [shape: bf16[128,768], index: 1, kind: input, shape index: {}]
  %s2 = inlined_call_operand.hbm [shape: bf16[384,128], index: 2, kind: input, shape index: {}]
  %s3 = inlined_call_operand.hbm [shape: bf16[16,128], index: 3, kind: output, shape index: {}]
  %s4 = sld [smem:[#allocation0]]
  $region42: #{tpu_custom_call.1} parent=0
    _
  %s6 = ssub.s32 1, %s4
  %s7 = scalar_select 0, %s6, %s4
  $region1: #{tpu_custom_call.1} parent=0
    #allocation3 [shape = 'u8[4096]{0}', space=vmem, size = 0x1000, scoped, tag = 'input window, operand 0, single buffered']
    #allocation4 [shape = 's32[1]{0}', space=sflag, size = 0x4, scoped, tag = 'scoped memory for tpu_custom_call.1']
    #allocation5 [shape = 's32[1]{0}', space=sflag, size = 0x4, scoped, tag = 'scoped memory for tpu_custom_call.1']
    #allocation6 [shape = 'u8[196608]{0}', space=vmem, size = 0x30000, scoped, tag = 'input window, operand 1, single buffered']
    #allocation7 [shape = 's32[1]{0}', space=sflag, size = 0x4, scoped, tag = 'scoped memory for tpu_custom_call.1']
    #allocation8 [shape = 'u8[98304]{0}', space=vmem, size = 0x18000, scoped, tag = 'input window, operand 2, single buffered']
    #allocation9 [shape = 'u8[4096]{0}', space=vmem, size = 0x1000, scoped, tag = 'output window, operand 0, single buffered']
    %8 = vsyncpa [#allocation4], 0
    %9 = vsyncpa [#allocation7], 0
    %10 = vsyncpa [#allocation5], 0
    // Predicated region
    $region2: #{tpu_custom_call.1} parent=1 // pred_check
      _
    $region3: #{tpu_custom_call.1} parent=1 // pred_check_branch
      %12 = sbr.rel (0) target = $region5
    $region4: #{tpu_custom_call.1} parent=1 // pred_region
      %s14 = ssub.s32 128, 128
      %15 = vsyncadd [#allocation4], %s14
      %s16 = sshll.u32 [#allocation3], 4
      %s17 = int_to_ptr.vmem [resolvable:$true] %s16
      %22 = dma.hbm_to_vmem [thread:$0]  %s0, 128, %s17, [#allocation4], 64, 64, 4
    $region5: #{tpu_custom_call.1} parent=1 // pred_fallthru
      _
    // Predicated region
    $region6: #{tpu_custom_call.1} parent=1 // pred_check
      _
    $region7: #{tpu_custom_call.1} parent=1 // pred_check_branch
      %24 = sbr.rel (0) target = $region9
    $region8: #{tpu_custom_call.1} parent=1 // pred_region
      %s26 = ssub.s32 6144, 6144
      %27 = vsyncadd [#allocation7], %s26
      %s28 = sshll.u32 [#allocation6], 4
      %s29 = int_to_ptr.vmem [resolvable:$true] %s28
      %34 = dma.hbm_to_vmem [thread:$0]  %s1, 6144, %s29, [#allocation7], 384, 384, 24
    $region9: #{tpu_custom_call.1} parent=1 // pred_fallthru
      _
    // Predicated region
    $region10: #{tpu_custom_call.1} parent=1 // pred_check
      _
    $region11: #{tpu_custom_call.1} parent=1 // pred_check_branch
      %36 = sbr.rel (0) target = $region13
    $region12: #{tpu_custom_call.1} parent=1 // pred_region
      %s38 = ssub.s32 3072, 3072
      %39 = vsyncadd [#allocation7], %s38
      %s40 = sshll.u32 [#allocation8], 4
      %s41 = int_to_ptr.vmem [resolvable:$true] %s40
      %46 = dma.hbm_to_vmem [thread:$0]  %s2, 3072, %s41, [#allocation7], 64, 64, 4
    $region13: #{tpu_custom_call.1} parent=1 // pred_fallthru
      _
    // Predicated region
    $region14: #{tpu_custom_call.1} parent=1 // pred_check
      _
    $region15: #{tpu_custom_call.1} parent=1 // pred_check_branch
      %48 = sbr.rel (0) target = $region17
    $region16: #{tpu_custom_call.1} parent=1 // pred_region
      %49 = dma.done [#allocation4], 128
    $region17: #{tpu_custom_call.1} parent=1 // pred_fallthru
      _
    // Predicated region
    $region18: #{tpu_custom_call.1} parent=1 // pred_check
      _
    $region19: #{tpu_custom_call.1} parent=1 // pred_check_branch
      %51 = sbr.rel (0) target = $region21
    $region20: #{tpu_custom_call.1} parent=1 // pred_region
      %52 = dma.done [#allocation7], 6144
    $region21: #{tpu_custom_call.1} parent=1 // pred_fallthru
      _
    // Predicated region
    $region22: #{tpu_custom_call.1} parent=1 // pred_check
      _
    $region23: #{tpu_custom_call.1} parent=1 // pred_check_branch
      %54 = sbr.rel (0) target = $region25
    $region24: #{tpu_custom_call.1} parent=1 // pred_region
      %55 = dma.done [#allocation7], 3072
    $region25: #{tpu_custom_call.1} parent=1 // pred_fallthru
      _
    %p57 = scmp.eq.s32.totalorder 0, 0
    // Predicated region
    $region26: #{tpu_custom_call.1} parent=1 // pred_check
      %p58 = pneg %p57
    $region27: #{tpu_custom_call.1} parent=1 // pred_check_branch
      %60 = sbr.rel (%p58) target = $region29
    $region28: #{tpu_custom_call.1} parent=1 // pred_region
      %61 = vst [vmem:[#allocation2] sm:$0xff] 0.0
      %62 = vst [vmem:[#allocation2 + $0x8] sm:$0xff] 0.0
    $region29: #{tpu_custom_call.1} parent=1 // pred_fallthru
      _
    %v63 = vld [vmem:[#allocation3] sm:$0xf]
    %v64 = vld [vmem:[#allocation3 + $0x4] sm:$0xf]
    %v65 = vld [vmem:[#allocation6] sm:$0xff]
    %v66 = vld [vmem:[#allocation6 + $0x8] sm:$0xff]
    %v67 = vld [vmem:[#allocation6 + $0x10] sm:$0xff]
    %v68 = vld [vmem:[#allocation6 + $0x18] sm:$0xff]
    %v69 = vld [vmem:[#allocation6 + $0x20] sm:$0xff]
    %v70 = vld [vmem:[#allocation6 + $0x28] sm:$0xff]
    %v71 = vld [vmem:[#allocation6 + $0x30] sm:$0xff]
    %v72 = vld [vmem:[#allocation6 + $0x38] sm:$0xff]
    %v73 = vld [vmem:[#allocation6 + $0x40] sm:$0xff]
    %v74 = vld [vmem:[#allocation6 + $0x48] sm:$0xff]
    %v75 = vld [vmem:[#allocation6 + $0x50] sm:$0xff]
    %v76 = vld [vmem:[#allocation6 + $0x58] sm:$0xff]
    %v77 = vld [vmem:[#allocation6 + $0x60] sm:$0xff]
    %v78 = vld [vmem:[#allocation6 + $0x68] sm:$0xff]
    %v79 = vld [vmem:[#allocation6 + $0x70] sm:$0xff]
    %v80 = vld [vmem:[#allocation6 + $0x78] sm:$0xff]
    %v81 = vld [vmem:[#allocation6 + $0x80] sm:$0xff]
    %v82 = vld [vmem:[#allocation6 + $0x88] sm:$0xff]
    %v83 = vld [vmem:[#allocation6 + $0x90] sm:$0xff]
    %v84 = vld [vmem:[#allocation6 + $0x98] sm:$0xff]
    %v85 = vld [vmem:[#allocation6 + $0xa0] sm:$0xff]
    %v86 = vld [vmem:[#allocation6 + $0xa8] sm:$0xff]
    %v87 = vld [vmem:[#allocation6 + $0xb0] sm:$0xff]
    %v88 = vld [vmem:[#allocation6 + $0xb8] sm:$0xff]
    %v89 = vld [vmem:[#allocation6 + $0xc0] sm:$0xff]
    %v90 = vld [vmem:[#allocation6 + $0xc8] sm:$0xff]
    %v91 = vld [vmem:[#allocation6 + $0xd0] sm:$0xff]
    %v92 = vld [vmem:[#allocation6 + $0xd8] sm:$0xff]
    %v93 = vld [vmem:[#allocation6 + $0xe0] sm:$0xff]
    %v94 = vld [vmem:[#allocation6 + $0xe8] sm:$0xff]
    %v95 = vld [vmem:[#allocation6 + $0xf0] sm:$0xff]
    %v96 = vld [vmem:[#allocation6 + $0xf8] sm:$0xff]
    %v97 = vld [vmem:[#allocation6 + $0x100] sm:$0xff]
    %v98 = vld [vmem:[#allocation6 + $0x108] sm:$0xff]
    %v99 = vld [vmem:[#allocation6 + $0x110] sm:$0xff]
    %v100 = vld [vmem:[#allocation6 + $0x118] sm:$0xff]
    %v101 = vld [vmem:[#allocation6 + $0x120] sm:$0xff]
    %v102 = vld [vmem:[#allocation6 + $0x128] sm:$0xff]
    %v103 = vld [vmem:[#allocation6 + $0x130] sm:$0xff]
    %v104 = vld [vmem:[#allocation6 + $0x138] sm:$0xff]
    %v105 = vld [vmem:[#allocation6 + $0x140] sm:$0xff]
    %v106 = vld [vmem:[#allocation6 + $0x148] sm:$0xff]
    %v107 = vld [vmem:[#allocation6 + $0x150] sm:$0xff]
    %v108 = vld [vmem:[#allocation6 + $0x158] sm:$0xff]
    %v109 = vld [vmem:[#allocation6 + $0x160] sm:$0xff]
    %v110 = vld [vmem:[#allocation6 + $0x168] sm:$0xff]
    %v111 = vld [vmem:[#allocation6 + $0x170] sm:$0xff]
    %v112 = vld [vmem:[#allocation6 + $0x178] sm:$0xff]
    %v115 = vunpack.c.l.b16 %v63
    %v116 = vunpack.c.l.b16 %v64
    %v117 = vpack.c.b16 %v116, %v115
    %v167 = vunpack.c.l.b16 %v65
    %v168 = vunpack.c.h.b16 %v65
    %v169 = vunpack.c.l.b16 %v66
    %v170 = vunpack.c.h.b16 %v66
    %v171 = vunpack.c.l.b16 %v67
    %v172 = vunpack.c.h.b16 %v67
    %v173 = vunpack.c.l.b16 %v68
    %v174 = vunpack.c.h.b16 %v68
    %v175 = vunpack.c.l.b16 %v69
    %v176 = vunpack.c.h.b16 %v69
    %v177 = vunpack.c.l.b16 %v70
    %v178 = vunpack.c.h.b16 %v70
    %v179 = vunpack.c.l.b16 %v71
    %v180 = vunpack.c.h.b16 %v71
    %v181 = vunpack.c.l.b16 %v72
    %v182 = vunpack.c.h.b16 %v72
    %v183 = vunpack.c.l.b16 %v73
    %v184 = vunpack.c.h.b16 %v73
    %v185 = vunpack.c.l.b16 %v74
    %v186 = vunpack.c.h.b16 %v74
    %v187 = vunpack.c.l.b16 %v75
    %v188 = vunpack.c.h.b16 %v75
    %v189 = vunpack.c.l.b16 %v76
    %v190 = vunpack.c.h.b16 %v76
    %v191 = vunpack.c.l.b16 %v77
    %v192 = vunpack.c.h.b16 %v77
    %v193 = vunpack.c.l.b16 %v78
    %v194 = vunpack.c.h.b16 %v78
    %v195 = vunpack.c.l.b16 %v79
    %v196 = vunpack.c.h.b16 %v79
    %v197 = vunpack.c.l.b16 %v80
    %v198 = vunpack.c.h.b16 %v80
    %v199 = vunpack.c.l.b16 %v81
    %v200 = vunpack.c.h.b16 %v81
    %v201 = vunpack.c.l.b16 %v82
    %v202 = vunpack.c.h.b16 %v82
    %v203 = vunpack.c.l.b16 %v83
    %v204 = vunpack.c.h.b16 %v83
    %v205 = vunpack.c.l.b16 %v84
    %v206 = vunpack.c.h.b16 %v84
    %v207 = vunpack.c.l.b16 %v85
    %v208 = vunpack.c.h.b16 %v85
    %v209 = vunpack.c.l.b16 %v86
    %v210 = vunpack.c.h.b16 %v86
    %v211 = vunpack.c.l.b16 %v87
    %v212 = vunpack.c.h.b16 %v87
    %v213 = vunpack.c.l.b16 %v88
    %v214 = vunpack.c.h.b16 %v88
    %v215 = vunpack.c.l.b16 %v89
    %v216 = vunpack.c.h.b16 %v89
    %v217 = vunpack.c.l.b16 %v90
    %v218 = vunpack.c.h.b16 %v90
    %v219 = vunpack.c.l.b16 %v91
    %v220 = vunpack.c.h.b16 %v91
    %v221 = vunpack.c.l.b16 %v92
    %v222 = vunpack.c.h.b16 %v92
    %v223 = vunpack.c.l.b16 %v93
    %v224 = vunpack.c.h.b16 %v93
    %v225 = vunpack.c.l.b16 %v94
    %v226 = vunpack.c.h.b16 %v94
    %v227 = vunpack.c.l.b16 %v95
    %v228 = vunpack.c.h.b16 %v95
    %v229 = vunpack.c.l.b16 %v96
    %v230 = vunpack.c.h.b16 %v96
    %v231 = vunpack.c.l.b16 %v97
    %v232 = vunpack.c.h.b16 %v97
    %v233 = vunpack.c.l.b16 %v98
    %v234 = vunpack.c.h.b16 %v98
    %v235 = vunpack.c.l.b16 %v99
    %v236 = vunpack.c.h.b16 %v99
    %v237 = vunpack.c.l.b16 %v100
    %v238 = vunpack.c.h.b16 %v100
    %v239 = vunpack.c.l.b16 %v101
    %v240 = vunpack.c.h.b16 %v101
    %v241 = vunpack.c.l.b16 %v102
    %v242 = vunpack.c.h.b16 %v102
    %v243 = vunpack.c.l.b16 %v103
    %v244 = vunpack.c.h.b16 %v103
    %v245 = vunpack.c.l.b16 %v104
    %v246 = vunpack.c.h.b16 %v104
    %v247 = vunpack.c.l.b16 %v105
    %v248 = vunpack.c.h.b16 %v105
    %v249 = vunpack.c.l.b16 %v106
    %v250 = vunpack.c.h.b16 %v106
    %v251 = vunpack.c.l.b16 %v107
    %v252 = vunpack.c.h.b16 %v107
    %v253 = vunpack.c.l.b16 %v108
    %v254 = vunpack.c.h.b16 %v108
    %v255 = vunpack.c.l.b16 %v109
    %v256 = vunpack.c.h.b16 %v109
    %v257 = vunpack.c.l.b16 %v110
    %v258 = vunpack.c.h.b16 %v110
    %v259 = vunpack.c.l.b16 %v111
    %v260 = vunpack.c.h.b16 %v111
    %v261 = vunpack.c.l.b16 %v112
    %v262 = vunpack.c.h.b16 %v112
    %v263 = vpack.c.b16 %v173, %v167
    %v264 = vpack.c.b16 %v174, %v168
    %v265 = vpack.c.b16 %v175, %v169
    %v266 = vpack.c.b16 %v176, %v170
    %v267 = vpack.c.b16 %v177, %v171
    %v268 = vpack.c.b16 %v178, %v172
    %v269 = vpack.c.b16 %v185, %v179
    %v270 = vpack.c.b16 %v186, %v180
    %v271 = vpack.c.b16 %v187, %v181
    %v272 = vpack.c.b16 %v188, %v182
    %v273 = vpack.c.b16 %v189, %v183
    %v274 = vpack.c.b16 %v190, %v184
    %v275 = vpack.c.b16 %v197, %v191
    %v276 = vpack.c.b16 %v198, %v192
    %v277 = vpack.c.b16 %v199, %v193
    %v278 = vpack.c.b16 %v200, %v194
    %v279 = vpack.c.b16 %v201, %v195
    %v280 = vpack.c.b16 %v202, %v196
    %v281 = vpack.c.b16 %v209, %v203
    %v282 = vpack.c.b16 %v210, %v204
    %v283 = vpack.c.b16 %v211, %v205
    %v284 = vpack.c.b16 %v212, %v206
    %v285 = vpack.c.b16 %v213, %v207
    %v286 = vpack.c.b16 %v214, %v208
    %v287 = vpack.c.b16 %v221, %v215
    %v288 = vpack.c.b16 %v222, %v216
    %v289 = vpack.c.b16 %v223, %v217
    %v290 = vpack.c.b16 %v224, %v218
    %v291 = vpack.c.b16 %v225, %v219
    %v292 = vpack.c.b16 %v226, %v220
    %v293 = vpack.c.b16 %v233, %v227
    %v294 = vpack.c.b16 %v234, %v228
    %v295 = vpack.c.b16 %v235, %v229
    %v296 = vpack.c.b16 %v236, %v230
    %v297 = vpack.c.b16 %v237, %v231
    %v298 = vpack.c.b16 %v238, %v232
    %v299 = vpack.c.b16 %v245, %v239
    %v300 = vpack.c.b16 %v246, %v240
    %v301 = vpack.c.b16 %v247, %v241
    %v302 = vpack.c.b16 %v248, %v242
    %v303 = vpack.c.b16 %v249, %v243
    %v304 = vpack.c.b16 %v250, %v244
    %v305 = vpack.c.b16 %v257, %v251
    %v306 = vpack.c.b16 %v258, %v252
    %v307 = vpack.c.b16 %v259, %v253
    %v308 = vpack.c.b16 %v260, %v254
    %v309 = vpack.c.b16 %v261, %v255
    %v310 = vpack.c.b16 %v262, %v256
    %359 = vmatprep.subr.bf16.mxu0 %v306
    %360 = vmatpush1.bf16.msra.mxu0 %v305
    %361 = vmatprep.subr.bf16.mxu0 %v300
    %362 = vmatpush1.bf16.msra.mxu0 %v299
    %363 = vmatprep.subr.bf16.mxu0 %v294
    %364 = vmatpush1.bf16.msra.mxu0 %v293
    %365 = vmatprep.subr.bf16.mxu0 %v288
    %366 = vmatpush1.bf16.msra.mxu0 %v287
    %367 = vmatprep.subr.bf16.mxu0 %v282
    %368 = vmatpush1.bf16.msra.mxu0 %v281
    %369 = vmatprep.subr.bf16.mxu0 %v276
    %370 = vmatpush1.bf16.msra.mxu0 %v275
    %371 = vmatprep.subr.bf16.mxu0 %v270
    %372 = vmatpush1.bf16.msra.mxu0 %v269
    %373 = vmatprep.subr.bf16.mxu0 %v264
    %374 = vmatpush1.bf16.msra.mxu0 %v263
    %375 = vmatprep.subr.bf16.mxu0 0
    %376 = vmatpush2.bf16.msra.mxu0 0
    %377 = vmatprep.subr.bf16.mxu0 0
    %378 = vmatpush2.bf16.msra.mxu0 0
    %379 = vmatprep.subr.bf16.mxu0 0
    %380 = vmatpush2.bf16.msra.mxu0 0
    %381 = vmatprep.subr.bf16.mxu0 0
    %382 = vmatpush2.bf16.msra.mxu0 0
    %383 = vmatprep.subr.bf16.mxu0 0
    %384 = vmatpush2.bf16.msra.mxu0 0
    %385 = vmatprep.subr.bf16.mxu0 0
    %386 = vmatpush2.bf16.msra.mxu0 0
    %387 = vmatprep.subr.bf16.mxu0 0
    %388 = vmatpush2.bf16.msra.mxu0 0
    %389 = vmatprep.subr.bf16.mxu0 0
    %390 = vmatpush2.bf16.msra.mxu0 0
    %391 = vmatprep.mubr.bf16.mxu0 0
    %392 = vmatmul.mubr.bf16.gmra.mxu0 %v117
    %v393 = vpop.f32.mrf.mxu0
    %v394 = vadd.f32 0.0, %v393
    %v395 = vpop.f32.mrf.mxu0
    %v396 = vadd.f32 0.0, %v395
    %v397 = vpop.f32.mrf.mxu0
    %v398 = vadd.f32 0.0, %v397
    %v399 = vpop.f32.mrf.mxu0
    %v400 = vadd.f32 0.0, %v399
    %401 = vdwg.mxu0
    %402 = vmatprep.subr.bf16.mxu0 %v308
    %403 = vmatpush1.bf16.msra.mxu0 %v307
    %404 = vmatprep.subr.bf16.mxu0 %v302
    %405 = vmatpush1.bf16.msra.mxu0 %v301
    %406 = vmatprep.subr.bf16.mxu0 %v296
    %407 = vmatpush1.bf16.msra.mxu0 %v295
    %408 = vmatprep.subr.bf16.mxu0 %v290
    %409 = vmatpush1.bf16.msra.mxu0 %v289
    %410 = vmatprep.subr.bf16.mxu0 %v284
    %411 = vmatpush1.bf16.msra.mxu0 %v283
    %412 = vmatprep.subr.bf16.mxu0 %v278
    %413 = vmatpush1.bf16.msra.mxu0 %v277
    %414 = vmatprep.subr.bf16.mxu0 %v272
    %415 = vmatpush1.bf16.msra.mxu0 %v271
    %416 = vmatprep.subr.bf16.mxu0 %v266
    %417 = vmatpush1.bf16.msra.mxu0 %v265
    %418 = vmatprep.subr.bf16.mxu0 0
    %419 = vmatpush2.bf16.msra.mxu0 0
    %420 = vmatprep.subr.bf16.mxu0 0
    %421 = vmatpush2.bf16.msra.mxu0 0
    %422 = vmatprep.subr.bf16.mxu0 0
    %423 = vmatpush2.bf16.msra.mxu0 0
    %424 = vmatprep.subr.bf16.mxu0 0
    %425 = vmatpush2.bf16.msra.mxu0 0
    %426 = vmatprep.subr.bf16.mxu0 0
    %427 = vmatpush2.bf16.msra.mxu0 0
    %428 = vmatprep.subr.bf16.mxu0 0
    %429 = vmatpush2.bf16.msra.mxu0 0
    %430 = vmatprep.subr.bf16.mxu0 0
    %431 = vmatpush2.bf16.msra.mxu0 0
    %432 = vmatprep.subr.bf16.mxu0 0
    %433 = vmatpush2.bf16.msra.mxu0 0
    %434 = vmatprep.mubr.bf16.mxu0 0
    %435 = vmatmul.mubr.bf16.gmra.mxu0 %v117
    %v436 = vpop.f32.mrf.mxu0
    %v437 = vadd.f32 0.0, %v436
    %v438 = vpop.f32.mrf.mxu0
    %v439 = vadd.f32 0.0, %v438
    %v440 = vpop.f32.mrf.mxu0
    %v441 = vadd.f32 0.0, %v440
    %v442 = vpop.f32.mrf.mxu0
    %v443 = vadd.f32 0.0, %v442
    %444 = vdwg.mxu0
    %445 = vmatprep.subr.bf16.mxu0 %v310
    %446 = vmatpush1.bf16.msra.mxu0 %v309
    %447 = vmatprep.subr.bf16.mxu0 %v304
    %448 = vmatpush1.bf16.msra.mxu0 %v303
    %449 = vmatprep.subr.bf16.mxu0 %v298
    %450 = vmatpush1.bf16.msra.mxu0 %v297
    %451 = vmatprep.subr.bf16.mxu0 %v292
    %452 = vmatpush1.bf16.msra.mxu0 %v291
    %453 = vmatprep.subr.bf16.mxu0 %v286
    %454 = vmatpush1.bf16.msra.mxu0 %v285
    %455 = vmatprep.subr.bf16.mxu0 %v280
    %456 = vmatpush1.bf16.msra.mxu0 %v279
    %457 = vmatprep.subr.bf16.mxu0 %v274
    %458 = vmatpush1.bf16.msra.mxu0 %v273
    %459 = vmatprep.subr.bf16.mxu0 %v268
    %460 = vmatpush1.bf16.msra.mxu0 %v267
    %461 = vmatprep.subr.bf16.mxu0 0
    %462 = vmatpush2.bf16.msra.mxu0 0
    %463 = vmatprep.subr.bf16.mxu0 0
    %464 = vmatpush2.bf16.msra.mxu0 0
    %465 = vmatprep.subr.bf16.mxu0 0
    %466 = vmatpush2.bf16.msra.mxu0 0
    %467 = vmatprep.subr.bf16.mxu0 0
    %468 = vmatpush2.bf16.msra.mxu0 0
    %469 = vmatprep.subr.bf16.mxu0 0
    %470 = vmatpush2.bf16.msra.mxu0 0
    %471 = vmatprep.subr.bf16.mxu0 0
    %472 = vmatpush2.bf16.msra.mxu0 0
    %473 = vmatprep.subr.bf16.mxu0 0
    %474 = vmatpush2.bf16.msra.mxu0 0
    %475 = vmatprep.subr.bf16.mxu0 0
    %476 = vmatpush2.bf16.msra.mxu0 0
    %477 = vmatprep.mubr.bf16.mxu0 0
    %478 = vmatmul.mubr.bf16.gmra.mxu0 %v117
    %v479 = vpop.f32.mrf.mxu0
    %v480 = vadd.f32 0.0, %v479
    %v481 = vpop.f32.mrf.mxu0
    %v482 = vadd.f32 0.0, %v481
    %v483 = vpop.f32.mrf.mxu0
    %v484 = vadd.f32 0.0, %v483
    %v485 = vpop.f32.mrf.mxu0
    %v486 = vadd.f32 0.0, %v485
    %487 = vdwg.mxu0
    %v488 = vxor.u32 %v394, 2147483648
    %v489 = vxor.u32 %v396, 2147483648
    %v490 = vxor.u32 %v437, 2147483648
    %v491 = vxor.u32 %v398, 2147483648
    %v492 = vxor.u32 %v400, 2147483648
    %v493 = vxor.u32 %v441, 2147483648
    %v494 = vmul.f32 %v488, 1.442695
    %v495 = vpow.pop %v494
    %v496 = vmul.f32 %v489, 1.442695
    %v497 = vpow.pop %v496
    %v498 = vmul.f32 %v490, 1.442695
    %v499 = vpow.pop %v498
    %v500 = vmul.f32 %v491, 1.442695
    %v501 = vpow.pop %v500
    %v502 = vmul.f32 %v492, 1.442695
    %v503 = vpow.pop %v502
    %v504 = vmul.f32 %v493, 1.442695
    %v505 = vpow.pop %v504
    %v506 = vadd.f32 %v495, 1.0
    %v507 = vadd.f32 %v497, 1.0
    %v508 = vadd.f32 %v499, 1.0
    %v509 = vadd.f32 %v501, 1.0
    %v510 = vadd.f32 %v503, 1.0
    %v511 = vadd.f32 %v505, 1.0
    %v512 = vrcp.pop %v506
    %v513 = vmul.f32 1.0, %v512
    %v514 = vrcp.pop %v507
    %v515 = vmul.f32 1.0, %v514
    %v516 = vrcp.pop %v508
    %v517 = vmul.f32 1.0, %v516
    %v518 = vrcp.pop %v509
    %v519 = vmul.f32 1.0, %v518
    %v520 = vrcp.pop %v510
    %v521 = vmul.f32 1.0, %v520
    %v522 = vrcp.pop %v511
    %v523 = vmul.f32 1.0, %v522
    %v524 = vmul.f32 %v394, %v513
    %v525 = vmul.f32 %v396, %v515
    %v526 = vmul.f32 %v437, %v517
    %v527 = vmul.f32 %v398, %v519
    %v528 = vmul.f32 %v400, %v521
    %v529 = vmul.f32 %v441, %v523
    %v530 = vmul.f32 %v524, %v439
    %v531 = vmul.f32 %v525, %v480
    %v532 = vmul.f32 %v526, %v482
    %v533 = vmul.f32 %v527, %v443
    %v534 = vmul.f32 %v528, %v484
    %v535 = vmul.f32 %v529, %v486
    %v536 = vld [vmem:[#allocation2] sm:$0xff]
    %v537 = vld [vmem:[#allocation2 + $0x8] sm:$0xff]
    %v538 = vpack.c.bf16 %v533, %v530
    %v539 = vpack.c.bf16 %v534, %v531
    %v540 = vpack.c.bf16 %v535, %v532
    %v541 = vld [vmem:[#allocation8] sm:$0xf]
    %v542 = vld [vmem:[#allocation8 + $0x4] sm:$0xf]
    %v543 = vld [vmem:[#allocation8 + $0x8] sm:$0xf]
    %v544 = vld [vmem:[#allocation8 + $0xc] sm:$0xf]
    %v545 = vld [vmem:[#allocation8 + $0x10] sm:$0xf]
    %v546 = vld [vmem:[#allocation8 + $0x14] sm:$0xf]
    %v547 = vld [vmem:[#allocation8 + $0x18] sm:$0xf]
    %v548 = vld [vmem:[#allocation8 + $0x1c] sm:$0xf]
    %v549 = vld [vmem:[#allocation8 + $0x20] sm:$0xf]
    %v550 = vld [vmem:[#allocation8 + $0x24] sm:$0xf]
    %v551 = vld [vmem:[#allocation8 + $0x28] sm:$0xf]
    %v552 = vld [vmem:[#allocation8 + $0x2c] sm:$0xf]
    %v553 = vld [vmem:[#allocation8 + $0x30] sm:$0xf]
    %v554 = vld [vmem:[#allocation8 + $0x34] sm:$0xf]
    %v555 = vld [vmem:[#allocation8 + $0x38] sm:$0xf]
    %v556 = vld [vmem:[#allocation8 + $0x3c] sm:$0xf]
    %v557 = vld [vmem:[#allocation8 + $0x40] sm:$0xf]
    %v558 = vld [vmem:[#allocation8 + $0x44] sm:$0xf]
    %v559 = vld [vmem:[#allocation8 + $0x48] sm:$0xf]
    %v560 = vld [vmem:[#allocation8 + $0x4c] sm:$0xf]
    %v561 = vld [vmem:[#allocation8 + $0x50] sm:$0xf]
    %v562 = vld [vmem:[#allocation8 + $0x54] sm:$0xf]
    %v563 = vld [vmem:[#allocation8 + $0x58] sm:$0xf]
    %v564 = vld [vmem:[#allocation8 + $0x5c] sm:$0xf]
    %v565 = vld [vmem:[#allocation8 + $0x60] sm:$0xf]
    %v566 = vld [vmem:[#allocation8 + $0x64] sm:$0xf]
    %v567 = vld [vmem:[#allocation8 + $0x68] sm:$0xf]
    %v568 = vld [vmem:[#allocation8 + $0x6c] sm:$0xf]
    %v569 = vld [vmem:[#allocation8 + $0x70] sm:$0xf]
    %v570 = vld [vmem:[#allocation8 + $0x74] sm:$0xf]
    %v571 = vld [vmem:[#allocation8 + $0x78] sm:$0xf]
    %v572 = vld [vmem:[#allocation8 + $0x7c] sm:$0xf]
    %v573 = vld [vmem:[#allocation8 + $0x80] sm:$0xf]
    %v574 = vld [vmem:[#allocation8 + $0x84] sm:$0xf]
    %v575 = vld [vmem:[#allocation8 + $0x88] sm:$0xf]
    %v576 = vld [vmem:[#allocation8 + $0x8c] sm:$0xf]
    %v577 = vld [vmem:[#allocation8 + $0x90] sm:$0xf]
    %v578 = vld [vmem:[#allocation8 + $0x94] sm:$0xf]
    %v579 = vld [vmem:[#allocation8 + $0x98] sm:$0xf]
    %v580 = vld [vmem:[#allocation8 + $0x9c] sm:$0xf]
    %v581 = vld [vmem:[#allocation8 + $0xa0] sm:$0xf]
    %v582 = vld [vmem:[#allocation8 + $0xa4] sm:$0xf]
    %v583 = vld [vmem:[#allocation8 + $0xa8] sm:$0xf]
    %v584 = vld [vmem:[#allocation8 + $0xac] sm:$0xf]
    %v585 = vld [vmem:[#allocation8 + $0xb0] sm:$0xf]
    %v586 = vld [vmem:[#allocation8 + $0xb4] sm:$0xf]
    %v587 = vld [vmem:[#allocation8 + $0xb8] sm:$0xf]
    %v588 = vld [vmem:[#allocation8 + $0xbc] sm:$0xf]
    %v637 = vunpack.c.l.b16 %v541
    %v638 = vunpack.c.l.b16 %v542
    %v639 = vunpack.c.l.b16 %v543
    %v640 = vunpack.c.l.b16 %v544
    %v641 = vunpack.c.l.b16 %v545
    %v642 = vunpack.c.l.b16 %v546
    %v643 = vunpack.c.l.b16 %v547
    %v644 = vunpack.c.l.b16 %v548
    %v645 = vunpack.c.l.b16 %v549
    %v646 = vunpack.c.l.b16 %v550
    %v647 = vunpack.c.l.b16 %v551
    %v648 = vunpack.c.l.b16 %v552
    %v649 = vunpack.c.l.b16 %v553
    %v650 = vunpack.c.l.b16 %v554
    %v651 = vunpack.c.l.b16 %v555
    %v652 = vunpack.c.l.b16 %v556
    %v653 = vunpack.c.l.b16 %v557
    %v654 = vunpack.c.l.b16 %v558
    %v655 = vunpack.c.l.b16 %v559
    %v656 = vunpack.c.l.b16 %v560
    %v657 = vunpack.c.l.b16 %v561
    %v658 = vunpack.c.l.b16 %v562
    %v659 = vunpack.c.l.b16 %v563
    %v660 = vunpack.c.l.b16 %v564
    %v661 = vunpack.c.l.b16 %v565
    %v662 = vunpack.c.l.b16 %v566
    %v663 = vunpack.c.l.b16 %v567
    %v664 = vunpack.c.l.b16 %v568
    %v665 = vunpack.c.l.b16 %v569
    %v666 = vunpack.c.l.b16 %v570
    %v667 = vunpack.c.l.b16 %v571
    %v668 = vunpack.c.l.b16 %v572
    %v669 = vunpack.c.l.b16 %v573
    %v670 = vunpack.c.l.b16 %v574
    %v671 = vunpack.c.l.b16 %v575
    %v672 = vunpack.c.l.b16 %v576
    %v673 = vunpack.c.l.b16 %v577
    %v674 = vunpack.c.l.b16 %v578
    %v675 = vunpack.c.l.b16 %v579
    %v676 = vunpack.c.l.b16 %v580
    %v677 = vunpack.c.l.b16 %v581
    %v678 = vunpack.c.l.b16 %v582
    %v679 = vunpack.c.l.b16 %v583
    %v680 = vunpack.c.l.b16 %v584
    %v681 = vunpack.c.l.b16 %v585
    %v682 = vunpack.c.l.b16 %v586
    %v683 = vunpack.c.l.b16 %v587
    %v684 = vunpack.c.l.b16 %v588
    %v685 = vpack.c.b16 %v638, %v637
    %v686 = vpack.c.b16 %v640, %v639
    %v687 = vpack.c.b16 %v642, %v641
    %v688 = vpack.c.b16 %v644, %v643
    %v689 = vpack.c.b16 %v646, %v645
    %v690 = vpack.c.b16 %v648, %v647
    %v691 = vpack.c.b16 %v650, %v649
    %v692 = vpack.c.b16 %v652, %v651
    %v693 = vpack.c.b16 %v654, %v653
    %v694 = vpack.c.b16 %v656, %v655
    %v695 = vpack.c.b16 %v658, %v657
    %v696 = vpack.c.b16 %v660, %v659
    %v697 = vpack.c.b16 %v662, %v661
    %v698 = vpack.c.b16 %v664, %v663
    %v699 = vpack.c.b16 %v666, %v665
    %v700 = vpack.c.b16 %v668, %v667
    %v701 = vpack.c.b16 %v670, %v669
    %v702 = vpack.c.b16 %v672, %v671
    %v703 = vpack.c.b16 %v674, %v673
    %v704 = vpack.c.b16 %v676, %v675
    %v705 = vpack.c.b16 %v678, %v677
    %v706 = vpack.c.b16 %v680, %v679
    %v707 = vpack.c.b16 %v682, %v681
    %v708 = vpack.c.b16 %v684, %v683
    %733 = vmatprep.subr.bf16.mxu0 0
    %734 = vmatpush1.bf16.msra.mxu0 %v692
    %735 = vmatprep.subr.bf16.mxu0 0
    %736 = vmatpush1.bf16.msra.mxu0 %v691
    %737 = vmatprep.subr.bf16.mxu0 0
    %738 = vmatpush1.bf16.msra.mxu0 %v690
    %739 = vmatprep.subr.bf16.mxu0 0
    %740 = vmatpush1.bf16.msra.mxu0 %v689
    %741 = vmatprep.subr.bf16.mxu0 0
    %742 = vmatpush1.bf16.msra.mxu0 %v688
    %743 = vmatprep.subr.bf16.mxu0 0
    %744 = vmatpush1.bf16.msra.mxu0 %v687
    %745 = vmatprep.subr.bf16.mxu0 0
    %746 = vmatpush1.bf16.msra.mxu0 %v686
    %747 = vmatprep.subr.bf16.mxu0 0
    %748 = vmatpush1.bf16.msra.mxu0 %v685
    %749 = vmatprep.subr.bf16.mxu0 0
    %750 = vmatpush2.bf16.msra.mxu0 %v700
    %751 = vmatprep.subr.bf16.mxu0 0
    %752 = vmatpush2.bf16.msra.mxu0 %v699
    %753 = vmatprep.subr.bf16.mxu0 0
    %754 = vmatpush2.bf16.msra.mxu0 %v698
    %755 = vmatprep.subr.bf16.mxu0 0
    %756 = vmatpush2.bf16.msra.mxu0 %v697
    %757 = vmatprep.subr.bf16.mxu0 0
    %758 = vmatpush2.bf16.msra.mxu0 %v696
    %759 = vmatprep.subr.bf16.mxu0 0
    %760 = vmatpush2.bf16.msra.mxu0 %v695
    %761 = vmatprep.subr.bf16.mxu0 0
    %762 = vmatpush2.bf16.msra.mxu0 %v694
    %763 = vmatprep.subr.bf16.mxu0 0
    %764 = vmatpush2.bf16.msra.mxu0 %v693
    %765 = vmatprep.mubr.bf16.mxu0 %v539
    %766 = vmatmul.mubr.bf16.gmra.mxu0 %v538
    %v767 = vpop.f32.mrf.mxu0
    %v768 = vadd.f32 0.0, %v767
    %v769 = vpop.f32.mrf.mxu0
    %v770 = vpop.f32.mrf.mxu0
    %v771 = vadd.f32 0.0, %v770
    %v772 = vpop.f32.mrf.mxu0
    %773 = vdwg.mxu0
    %774 = vmatprep.subr.bf16.mxu0 0
    %775 = vmatpush1.bf16.msra.mxu0 %v708
    %776 = vmatprep.subr.bf16.mxu0 0
    %777 = vmatpush1.bf16.msra.mxu0 %v707
    %778 = vmatprep.subr.bf16.mxu0 0
    %779 = vmatpush1.bf16.msra.mxu0 %v706
    %780 = vmatprep.subr.bf16.mxu0 0
    %781 = vmatpush1.bf16.msra.mxu0 %v705
    %782 = vmatprep.subr.bf16.mxu0 0
    %783 = vmatpush1.bf16.msra.mxu0 %v704
    %784 = vmatprep.subr.bf16.mxu0 0
    %785 = vmatpush1.bf16.msra.mxu0 %v703
    %786 = vmatprep.subr.bf16.mxu0 0
    %787 = vmatpush1.bf16.msra.mxu0 %v702
    %788 = vmatprep.subr.bf16.mxu0 0
    %789 = vmatpush1.bf16.msra.mxu0 %v701
    %790 = vmatprep.subr.bf16.mxu0 0
    %791 = vmatpush2.bf16.msra.mxu0 0
    %792 = vmatprep.subr.bf16.mxu0 0
    %793 = vmatpush2.bf16.msra.mxu0 0
    %794 = vmatprep.subr.bf16.mxu0 0
    %795 = vmatpush2.bf16.msra.mxu0 0
    %796 = vmatprep.subr.bf16.mxu0 0
    %797 = vmatpush2.bf16.msra.mxu0 0
    %798 = vmatprep.subr.bf16.mxu0 0
    %799 = vmatpush2.bf16.msra.mxu0 0
    %800 = vmatprep.subr.bf16.mxu0 0
    %801 = vmatpush2.bf16.msra.mxu0 0
    %802 = vmatprep.subr.bf16.mxu0 0
    %803 = vmatpush2.bf16.msra.mxu0 0
    %804 = vmatprep.subr.bf16.mxu0 0
    %805 = vmatpush2.bf16.msra.mxu0 0
    %806 = vmatprep.mubr.bf16.mxu0 0
    %807 = vmatmul.mubr.bf16.gmra.mxu0 %v540
    %v808 = vpop.f32.mrf.mxu0
    %v809 = vadd.f32 %v768, %v808
    %v810 = vpop.f32.mrf.mxu0
    %v811 = vpop.f32.mrf.mxu0
    %v812 = vadd.f32 %v771, %v811
    %v813 = vpop.f32.mrf.mxu0
    %814 = vdwg.mxu0
    %v815 = vadd.f32 %v536, %v809
    %v816 = vadd.f32 %v537, %v812
    %817 = vst [vmem:[#allocation2] sm:$0xff] %v815
    %818 = vst [vmem:[#allocation2 + $0x8] sm:$0xff] %v816
    // Predicated region
    $region30: #{tpu_custom_call.1} parent=1 // pred_check
      %p819 = pneg %p57
    $region31: #{tpu_custom_call.1} parent=1 // pred_check_branch
      %821 = sbr.rel (%p819) target = $region33
    $region32: #{tpu_custom_call.1} parent=1 // pred_region
      %v822 = vld [vmem:[#allocation2] sm:$0xff]
      %v823 = vld [vmem:[#allocation2 + $0x8] sm:$0xff]
      %v824 = vpack.c.bf16 %v823, %v822
      %v826 = vunpack.c.l.b16 %v824
      %v827 = vunpack.c.h.b16 %v824
      %v828 = vpack.c.b16 %v826, %v826
      %v829 = vpack.c.b16 %v827, %v827
      %832 = vst [vmem:[#allocation9] sm:$0xf] %v828
      %833 = vst [vmem:[#allocation9 + $0x4] sm:$0xf] %v829
    $region33: #{tpu_custom_call.1} parent=1 // pred_fallthru
      _
    // Predicated region
    $region34: #{tpu_custom_call.1} parent=1 // pred_check
      _
    $region35: #{tpu_custom_call.1} parent=1 // pred_check_branch
      %835 = sbr.rel (0) target = $region37
    $region36: #{tpu_custom_call.1} parent=1 // pred_region
      %s837 = ssub.s32 128, 128
      %838 = vsyncadd [#allocation5], %s837
      %s839 = sshll.u32 [#allocation9], 4
      %s840 = int_to_ptr.vmem [resolvable:$true] %s839
      %845 = dma.vmem_to_hbm [thread:$0]  %s840, 128, %s3, [#allocation5], 64, 64, 4
    $region37: #{tpu_custom_call.1} parent=1 // pred_fallthru
      _
    // Predicated region
    $region38: #{tpu_custom_call.1} parent=1 // pred_check
      _
    $region39: #{tpu_custom_call.1} parent=1 // pred_check_branch
      %847 = sbr.rel (0) target = $region41
    $region40: #{tpu_custom_call.1} parent=1 // pred_region
      %848 = dma.done [#allocation5], 128
    $region41: #{tpu_custom_call.1} parent=1 // pred_fallthru
      _
    %849 = vsyncpa [#allocation4], 1
    %850 = vsyncpa [#allocation7], 1
    %851 = vsyncpa [#allocation5], 1

</llo_original>
